<compile_context>
chip_gen: v7x
topology: tpu7x:2x2x1
jax: 0.10.0
libtpu: 0.0.40
codegen_flags: <defaults>
</compile_context>

<pallas_src>
import jax
import jax.numpy as jnp
from jax.experimental import pallas as pl
from jax.experimental.pallas import tpu as pltpu


def _round_up(a: int, m: int) -> int:
    return ((a + m - 1) // m) * m


def _make_mlp_kernel(n_hidden: int, matmul_dtype):
    """Fused MLP kernel: relu(fin) -> sigmoid(hidden)* -> fout.

    All activations are (features, block_batch) with batch on the lane axis.
    Matmul inputs are `matmul_dtype`; accumulation and elementwise stay f32.
    """

    def kernel(*refs):
        x_ref = refs[0]
        o_ref = refs[-1]
        p = refs[1:-1]  # alternating (w, b); w is (out, in), b is (out, 1) f32

        # fin + relu:  (h0, in) @ (in, bb) -> (h0, bb), f32 accumulate.
        w, b = p[0], p[1]
        x = x_ref[...].astype(matmul_dtype)
        z = jnp.dot(w[...], x, preferred_element_type=jnp.float32) + b[...]
        z = jnp.maximum(z, 0.0)

        # hidden layers + sigmoid (matmul inputs in matmul_dtype, accumulate
        # f32, elementwise stays f32 -> no bf16 VALU/EUP converts on v5e).
        for i in range(n_hidden):
            w, b = p[2 + 2 * i], p[3 + 2 * i]
            z = jnp.dot(w[...], z.astype(matmul_dtype),
                        preferred_element_type=jnp.float32) + b[...]
            z = jax.nn.sigmoid(z)

        # fout (no activation): (ndof, h_last) @ (h_last, bb) -> (ndof, bb).
        w, b = p[-2], p[-1]
        o_ref[...] = (
            jnp.dot(w[...], z.astype(matmul_dtype),
                    preferred_element_type=jnp.float32) + b[...]
        ).astype(o_ref.dtype)

    return kernel


def beam_approximator_forward_t(x_t, params, *, block_batch=None,
                                param_dtype=jnp.bfloat16,
                                out_dtype=jnp.bfloat16):
    """Fused BeamApproximator forward, kernel-native layout (no layout passes).

    x_t:    (input_dim, batch) float array (f32 works; pass bf16 to halve the
            x read traffic).  Batch maps to the 128-lane axis.
    params: [(w, b), ...] with w (out_features, in_features), b (out_features,)
            — the PyTorch nn.Linear layout of BeamApproximator.
    Returns (ndof, batch) in `out_dtype` (default bf16).  Let the consumer
    fuse any transpose; see `beam_approximator_forward` for the drop-in
    (batch, input_dim) -> (batch, ndof) contract.
    """
    input_dim, batch = x_t.shape
    ndof = params[-1][0].shape[0]
    n_hidden = len(params) - 2

    # Lane-dense batch tiles (multiples of 128).  Target large tiles (amortize
    # the ~0.35us/step grid overhead and make each x/out DMA big), but
    # guarantee >=2 grid steps whenever batch > 128 so the "parallel" batch
    # axis can shard across both TensorCores on dual-TC chips (v7x).
    if block_batch is None:
        block_batch = min(4096, _round_up(pl.cdiv(batch, 2), 128))
    block_batch = max(128, min(_round_up(int(block_batch), 128),
                               _round_up(batch, 128)))
    grid = (pl.cdiv(batch, block_batch),)  # trailing partial block is masked

    # Weights (out, in) in param_dtype, biases (out, 1) f32.  These are tiny,
    # one-time casts — not per-batch traffic.
    flat_params = []
    for w, b in params:
        flat_params.append(jnp.asarray(w, param_dtype))
        flat_params.append(jnp.asarray(b, jnp.float32).reshape(-1, 1))

    in_specs = [pl.BlockSpec((input_dim, block_batch), lambda i: (0, i))]
    # TODO(synk): if profiling shows exposed x DMA at large block_batch, add
    # pipeline_mode=pl.Buffered(3) to the x spec above (weights/out default).
    for arr in flat_params:
        # Constant index_map -> block stays resident across the batch grid.
        in_specs.append(pl.BlockSpec(arr.shape, lambda i: (0, 0)))
    out_spec = pl.BlockSpec((ndof, block_batch), lambda i: (0, i))

    dims = [input_dim] + [w.shape[0] for w, _ in params]       # in, h..., ndof
    flops = 2 * batch * sum(a * b for a, b in zip(dims[:-1], dims[1:]))
    transcendentals = batch * sum(dims[2:-1])                   # sigmoids
    bytes_accessed = (x_t.size * x_t.dtype.itemsize
                      + sum(a.size * a.dtype.itemsize for a in flat_params)
                      + batch * ndof * jnp.dtype(out_dtype).itemsize)

    return pl.pallas_call(
        _make_mlp_kernel(n_hidden, param_dtype),
        out_shape=jax.ShapeDtypeStruct((ndof, batch), out_dtype),
        grid_spec=pltpu.PrefetchScalarGridSpec(
            num_scalar_prefetch=0,
            grid=grid,
            in_specs=in_specs,
            out_specs=out_spec,
        ),
        compiler_params=pltpu.CompilerParams(
            dimension_semantics=("parallel",),
            # Per-step footprint is <~2 MiB even at block_batch=4096; 32 MiB
            # is valid on every generation incl. v7x's 64 MiB physical VMEM.
            vmem_limit_bytes=32 * 1024 * 1024,
        ),
        cost_estimate=pl.CostEstimate(
            flops=flops,
            transcendentals=transcendentals,
            bytes_accessed=bytes_accessed,
        ),
    )(x_t, *flat_params)


def beam_approximator_forward(x, params, **kw):
    """Drop-in PyTorch-layout wrapper: (batch, input_dim) -> (batch, ndof).

    Costs one extra layout pass on each side; prefer the kernel-native
    `beam_approximator_forward_t` in hot paths.
    """
    out_t = beam_approximator_forward_t(jnp.transpose(x), params, **kw)
    return jnp.transpose(out_t)


def init_params(key, input_dim, layers, ndof):
    """Deterministic init mirroring BeamApproximator.__init__ (weights (out, in))."""
    dims = [input_dim] + list(layers) + [ndof]
    params = []
    for i in range(len(dims) - 1):
        fan_in, fan_out = dims[i], dims[i + 1]
        key, kw, kb = jax.random.split(key, 3)
        bound = 1.0 / jnp.sqrt(fan_in)
        w = jax.random.uniform(kw, (fan_out, fan_in), jnp.float32, -bound, bound)
        b = jax.random.uniform(kb, (fan_out,), jnp.float32, -bound, bound)
        params.append((w, b))
    return params


def reference_forward(x, params, compute_dtype=jnp.float32):
    """Pure-JAX reference of the PyTorch forward (optionally bf16 matmul inputs)."""
    cd = compute_dtype
    w0, b0 = params[0]
    z = jnp.maximum(
        jnp.dot(x.astype(cd), w0.T.astype(cd),
                preferred_element_type=jnp.float32) + b0, 0.0)
    for w, b in params[1:-1]:
        z = jax.nn.sigmoid(
            jnp.dot(z.astype(cd), w.T.astype(cd),
                    preferred_element_type=jnp.float32) + b)
    wo, bo = params[-1]
    return jnp.dot(z.astype(cd), wo.T.astype(cd),
                   preferred_element_type=jnp.float32) + bo


if __name__ == "__main__":
    # Small shapes implied by the module: per-sample feature vector -> MLP -> ndof.
    input_dim = 16
    layers = [32, 32]     # fin: 16->32, hidden: 32->32, fout: 32->ndof
    ndof = 8
    batch = 256           # heuristic picks block_batch=128 -> grid=(2,)

    key = jax.random.PRNGKey(0)
    key, kx = jax.random.split(key)
    # Kernel-native layout: features on sublanes, batch on the lane axis.
    x_t = jax.random.normal(kx, (input_dim, batch), jnp.float32)
    params = init_params(key, input_dim, layers, ndof)

    # Fast path: bf16 weights/matmul inputs, f32 accumulate, bf16 output,
    # kernel-native (ndof, batch) output layout.
    out_t = beam_approximator_forward_t(x_t, params)
    out_t = jax.block_until_ready(out_t)
    assert out_t.shape == (ndof, batch)

    # Full-precision path through the drop-in (batch-major) wrapper, used for
    # a tight correctness check against the PyTorch-equivalent f32 forward.
    x = jnp.transpose(x_t)                          # test-setup only
    out_f32 = beam_approximator_forward(x, params, param_dtype=jnp.float32,
                                        out_dtype=jnp.float32)
    out_f32 = jax.block_until_ready(out_f32)
    assert out_f32.shape == (batch, ndof)

    ref = reference_forward(x, params)              # (batch, ndof) f32

    # f32 kernel path must match the f32 reference tightly.
    assert jnp.allclose(out_f32, ref, atol=1e-4, rtol=1e-4), \
        "f32 kernel path mismatch vs f32 reference"

    # bf16 fast path: loose tolerance vs f32 reference (bf16 matmul inputs +
    # bf16 output store).
    assert jnp.allclose(jnp.transpose(out_t).astype(jnp.float32), ref,
                        atol=5e-2, rtol=5e-2), \
        "bf16 kernel path mismatch vs f32 reference"

    print("KERNEL_OK")
</pallas_src>

<mosaic_0001>
module attributes {stable_mosaic.version = 11 : i64} {
  func.func @kernel(%arg0: i32, %arg1: memref<16x128xf32, #tpu.memory_space<vmem>>, %arg2: memref<32x16xbf16, #tpu.memory_space<vmem>>, %arg3: memref<32x1xf32, #tpu.memory_space<vmem>>, %arg4: memref<32x32xbf16, #tpu.memory_space<vmem>>, %arg5: memref<32x1xf32, #tpu.memory_space<vmem>>, %arg6: memref<8x32xbf16, #tpu.memory_space<vmem>>, %arg7: memref<8x1xf32, #tpu.memory_space<vmem>>, %arg8: memref<8x128xbf16, #tpu.memory_space<vmem>>) attributes {dimension_semantics = [#tpu.dimension_semantics<parallel>], iteration_bounds = array<i64: 2>, scalar_prefetch = 0 : i64, scratch_operands = 0 : i64, tpu.core_type = #tpu.core_type<tc>, window_params = [{transform_indices = @transform_0, window_bounds = array<i64: 16, 128>}, {pipeline_mode = #tpu.pipeline_mode<synchronous>, transform_indices = @transform_1, window_bounds = array<i64: 32, 16>}, {pipeline_mode = #tpu.pipeline_mode<synchronous>, transform_indices = @transform_2, window_bounds = array<i64: 32, 1>}, {pipeline_mode = #tpu.pipeline_mode<synchronous>, transform_indices = @transform_3, window_bounds = array<i64: 32, 32>}, {pipeline_mode = #tpu.pipeline_mode<synchronous>, transform_indices = @transform_4, window_bounds = array<i64: 32, 1>}, {pipeline_mode = #tpu.pipeline_mode<synchronous>, transform_indices = @transform_5, window_bounds = array<i64: 8, 32>}, {pipeline_mode = #tpu.pipeline_mode<synchronous>, transform_indices = @transform_6, window_bounds = array<i64: 8, 1>}, {transform_indices = @transform_7, window_bounds = array<i64: 8, 128>}]} {
    %c0 = arith.constant 0 : index
    %c0_0 = arith.constant 0 : index
    %0 = vector.load %arg1[%c0, %c0_0] : memref<16x128xf32, #tpu.memory_space<vmem>>, vector<16x128xf32>
    %1 = arith.truncf %0 : vector<16x128xf32> to vector<16x128xbf16>
    %c0_1 = arith.constant 0 : index
    %c0_2 = arith.constant 0 : index
    %2 = vector.load %arg2[%c0_1, %c0_2] : memref<32x16xbf16, #tpu.memory_space<vmem>>, vector<32x16xbf16>
    %cst = arith.constant dense<0.000000e+00> : vector<32x128xf32>
    %3 = tpu.matmul %2, %1, %cst {dimension_numbers = #tpu.dot_dimension_numbers<[1], [0], [0], [1], [0, 0, 1, 1], [], []>} : vector<32x16xbf16>, vector<16x128xbf16>, vector<32x128xf32> -> vector<32x128xf32>
    %c0_3 = arith.constant 0 : index
    %c0_4 = arith.constant 0 : index
    %4 = vector.load %arg3[%c0_3, %c0_4] : memref<32x1xf32, #tpu.memory_space<vmem>>, vector<32x1xf32>
    %5 = vector.broadcast %4 : vector<32x1xf32> to vector<32x128xf32>
    %6 = arith.addf %3, %5 : vector<32x128xf32>
    %cst_5 = arith.constant 0.000000e+00 : f32
    %7 = vector.broadcast %cst_5 : f32 to vector<32x128xf32>
    %8 = arith.maximumf %6, %7 : vector<32x128xf32>
    %c0_6 = arith.constant 0 : index
    %c0_7 = arith.constant 0 : index
    %9 = vector.load %arg4[%c0_6, %c0_7] : memref<32x32xbf16, #tpu.memory_space<vmem>>, vector<32x32xbf16>
    %10 = arith.truncf %8 : vector<32x128xf32> to vector<32x128xbf16>
    %cst_8 = arith.constant dense<0.000000e+00> : vector<32x128xf32>
    %11 = tpu.matmul %9, %10, %cst_8 {dimension_numbers = #tpu.dot_dimension_numbers<[1], [0], [0], [1], [0, 0, 1, 1], [], []>} : vector<32x32xbf16>, vector<32x128xbf16>, vector<32x128xf32> -> vector<32x128xf32>
    %c0_9 = arith.constant 0 : index
    %c0_10 = arith.constant 0 : index
    %12 = vector.load %arg5[%c0_9, %c0_10] : memref<32x1xf32, #tpu.memory_space<vmem>>, vector<32x1xf32>
    %13 = vector.broadcast %12 : vector<32x1xf32> to vector<32x128xf32>
    %14 = arith.addf %11, %13 : vector<32x128xf32>
    %15 = arith.negf %14 : vector<32x128xf32>
    %16 = math.exp %15 : vector<32x128xf32>
    %cst_11 = arith.constant 1.000000e+00 : f32
    %17 = vector.broadcast %cst_11 : f32 to vector<32x128xf32>
    %18 = arith.addf %17, %16 : vector<32x128xf32>
    %19 = arith.divf %17, %18 : vector<32x128xf32>
    %c0_12 = arith.constant 0 : index
    %c0_13 = arith.constant 0 : index
    %20 = vector.load %arg6[%c0_12, %c0_13] : memref<8x32xbf16, #tpu.memory_space<vmem>>, vector<8x32xbf16>
    %21 = arith.truncf %19 : vector<32x128xf32> to vector<32x128xbf16>
    %cst_14 = arith.constant dense<0.000000e+00> : vector<8x128xf32>
    %22 = tpu.matmul %20, %21, %cst_14 {dimension_numbers = #tpu.dot_dimension_numbers<[1], [0], [0], [1], [0, 0, 1, 1], [], []>} : vector<8x32xbf16>, vector<32x128xbf16>, vector<8x128xf32> -> vector<8x128xf32>
    %c0_15 = arith.constant 0 : index
    %c0_16 = arith.constant 0 : index
    %23 = vector.load %arg7[%c0_15, %c0_16] : memref<8x1xf32, #tpu.memory_space<vmem>>, vector<8x1xf32>
    %24 = vector.broadcast %23 : vector<8x1xf32> to vector<8x128xf32>
    %25 = arith.addf %22, %24 : vector<8x128xf32>
    %26 = arith.truncf %25 : vector<8x128xf32> to vector<8x128xbf16>
    %c0_17 = arith.constant 0 : index
    %c0_18 = arith.constant 0 : index
    %27 = vector.load %arg8[%c0_17, %c0_18] : memref<8x128xbf16, #tpu.memory_space<vmem>>, vector<8x128xbf16>
    tpu.vector_store %arg8[%c0_17, %c0_18], %26 {strides = array<i32>} : memref<8x128xbf16, #tpu.memory_space<vmem>>, vector<8x128xbf16>,
    return
  }
  func.func @transform_0(%arg0: i32) -> (i32, i32) {
    %c0_i32 = arith.constant 0 : i32
    %c0_i32_0 = arith.constant 0 : i32
    return %c0_i32, %arg0 : i32, i32
  }
  func.func @transform_1(%arg0: i32) -> (i32, i32) {
    %c0_i32 = arith.constant 0 : i32
    %c0_i32_0 = arith.constant 0 : i32
    %c0_i32_1 = arith.constant 0 : i32
    return %c0_i32, %c0_i32_0 : i32, i32
  }
  func.func @transform_2(%arg0: i32) -> (i32, i32) {
    %c0_i32 = arith.constant 0 : i32
    %c0_i32_0 = arith.constant 0 : i32
    %c0_i32_1 = arith.constant 0 : i32
    return %c0_i32, %c0_i32_0 : i32, i32
  }
  func.func @transform_3(%arg0: i32) -> (i32, i32) {
    %c0_i32 = arith.constant 0 : i32
    %c0_i32_0 = arith.constant 0 : i32
    %c0_i32_1 = arith.constant 0 : i32
    return %c0_i32, %c0_i32_0 : i32, i32
  }
  func.func @transform_4(%arg0: i32) -> (i32, i32) {
    %c0_i32 = arith.constant 0 : i32
    %c0_i32_0 = arith.constant 0 : i32
    %c0_i32_1 = arith.constant 0 : i32
    return %c0_i32, %c0_i32_0 : i32, i32
  }
  func.func @transform_5(%arg0: i32) -> (i32, i32) {
    %c0_i32 = arith.constant 0 : i32
    %c0_i32_0 = arith.constant 0 : i32
    %c0_i32_1 = arith.constant 0 : i32
    return %c0_i32, %c0_i32_0 : i32, i32
  }
  func.func @transform_6(%arg0: i32) -> (i32, i32) {
    %c0_i32 = arith.constant 0 : i32
    %c0_i32_0 = arith.constant 0 : i32
    %c0_i32_1 = arith.constant 0 : i32
    return %c0_i32, %c0_i32_0 : i32, i32
  }
  func.func @transform_7(%arg0: i32) -> (i32, i32) {
    %c0_i32 = arith.constant 0 : i32
    %c0_i32_0 = arith.constant 0 : i32
    return %c0_i32, %arg0 : i32, i32
  }
}

</mosaic_0001>

<llo_original>
// kernel: tpu_custom_call.1
$region0: #{tpu_custom_call.1}
  #allocation0 [shape = 'u32[]', space=smem, size = 0x4, offset = 0x4, fixed_abs, tag = 'smem constant byte address 0x4 - core index']
  #allocation1 [shape = 'u32[144,128]{1,0:T(1,128)}', space=vmem, size = 0x12000, scoped, tag = 'internal scratch']
  %s0 = inlined_call_operand.vmem [shape: f32[16,256], index: 0, kind: input, shape index: {}]
  %s1 = inlined_call_operand.vmem [shape: bf16[32,16], index: 1, kind: input, shape index: {}]
  %s2 = inlined_call_operand.vmem [shape: f32[32,1], index: 2, kind: input, shape index: {}]
  %s3 = inlined_call_operand.vmem [shape: bf16[32,32], index: 3, kind: input, shape index: {}]
  %s4 = inlined_call_operand.vmem [shape: f32[32,1], index: 4, kind: input, shape index: {}]
  %s5 = inlined_call_operand.vmem [shape: bf16[8,32], index: 5, kind: input, shape index: {}]
  %s6 = inlined_call_operand.vmem [shape: f32[8,1], index: 6, kind: input, shape index: {}]
  %s7 = inlined_call_operand.hbm [shape: bf16[8,256], index: 7, kind: output, shape index: {}]
  %s8 = sld [smem:[#allocation0]]
  $region99: #{tpu_custom_call.1} parent=0
    _
  %s10 = ssub.s32 1, %s8
  %s11 = scalar_select 0, %s10, %s8
  $region1: #{tpu_custom_call.1} parent=0
    #allocation2 [shape = 'u8[16384]{0}', space=vmem, size = 0x4000, scoped, tag = 'input window, operand 0']
    #allocation3 [shape = 'u8[4096]{0}', space=vmem, size = 0x1000, scoped, tag = 'output window, operand 0']
    #allocation4 [shape = 's32[2]{0}', space=sflag, size = 0x8, scoped, tag = 'scoped memory for tpu_custom_call.1']
    %12 = vsyncpa [#allocation4], 0
    %s13 = scalar_lea.sflag [#allocation4], 1
    %14 = vsyncpa %s13, 0
    loop: start=0, step=1, limit=4
    $region2: #{tpu_custom_call.1} parent=1 // loop_pre_header
      _
    $region3: #{tpu_custom_call.1} parent=1 // loop_header
      %s16 = sphi 0, %s20
      %p17 = scmp.ge.s32.totalorder %s16, 4
      %s26 = sphi 0, %s28
      %s29 = sphi 0, %s26
      %s30 = sphi 0, %s29
      %s46 = sphi 0, %s30
      %s50 = sphi 0, %s50
      %s52 = sphi 0, %s50
      %s53 = sphi 0, %s52
      %s67 = sphi 0, %s53
      %s71 = sphi 0, %s71
      %s73 = sphi 0, %s71
      %s74 = sphi 0, %s73
      %s88 = sphi 0, %s74
      %s92 = sphi 0, %s92
      %s94 = sphi 0, %s92
      %s95 = sphi 0, %s94
      %s109 = sphi 0, %s95
      %s113 = sphi 0, %s113
      %s115 = sphi 0, %s113
      %s116 = sphi 0, %s115
      %s130 = sphi 0, %s116
      %s134 = sphi 0, %s134
      %s136 = sphi 0, %s134
      %s137 = sphi 0, %s136
      %s151 = sphi 0, %s137
      %s155 = sphi 0, %s155
      %s157 = sphi 0, %s155
      %s158 = sphi 0, %s157
      %s172 = sphi 0, %s158
      %s178 = sphi 0, %s180
      %s181 = sphi 0, %s178
      %s182 = sphi 0, %s181
      %s198 = sphi 0, %s182
    $region4: #{tpu_custom_call.1} parent=1 // loop_header_branch
      %19 = sbr.rel (%p17) target = $region8
    $region5: #{tpu_custom_call.1} parent=1 // loop_body
      %s21 = ssub.s32 %s16, 1
      %s22 = ssub.s32 %s16, 2
      %s23 = sadd.s32 %s16, 1
      %s24 = ssub.s32 %s16, %s23
      %p25 = scmp.eq.s32.totalorder %s24, 0
      %s27 = sadd.s32 %s26, 1
      %s28 = scalar_select %p25, %s26, %s27
      %p31 = pneg %p25
      %p32 = scmp.eq.s32.totalorder %s16, 1
      %p33 = por %p31, %p32
      %p34 = scmp.ne.s32.totalorder %s26, %s29
      %p35 = scmp.eq.s32.totalorder %s16, 0
      %p36 = por %p34, %p35
      %p37 = scmp.ne.s32.totalorder %s26, %s29
      %p38 = scmp.eq.s32.totalorder %s21, 1
      %p39 = por %p37, %p38
      %p40 = scmp.ne.s32.totalorder %s29, %s30
      %p41 = scmp.eq.s32.totalorder %s21, 0
      %p42 = por %p40, %p41
      %p43 = scmp.ne.s32.totalorder %s29, %s30
      %p44 = scmp.eq.s32.totalorder %s22, 1
      %p45 = por %p43, %p44
      %p47 = scmp.ne.s32.totalorder %s30, %s46
      %p48 = scmp.eq.s32.totalorder %s22, 0
      %p49 = por %p47, %p48
      %s51 = sadd.s32 %s50, 1
      %p54 = scmp.eq.s32.totalorder %s16, 1
      %p55 = scmp.ne.s32.totalorder %s50, %s52
      %p56 = scmp.eq.s32.totalorder %s16, 0
      %p57 = por %p55, %p56
      %p58 = scmp.ne.s32.totalorder %s50, %s52
      %p59 = scmp.eq.s32.totalorder %s21, 1
      %p60 = por %p58, %p59
      %p61 = scmp.ne.s32.totalorder %s52, %s53
      %p62 = scmp.eq.s32.totalorder %s21, 0
      %p63 = por %p61, %p62
      %p64 = scmp.ne.s32.totalorder %s52, %s53
      %p65 = scmp.eq.s32.totalorder %s22, 1
      %p66 = por %p64, %p65
      %p68 = scmp.ne.s32.totalorder %s53, %s67
      %p69 = scmp.eq.s32.totalorder %s22, 0
      %p70 = por %p68, %p69
      %s72 = sadd.s32 %s71, 1
      %p75 = scmp.eq.s32.totalorder %s16, 1
      %p76 = scmp.ne.s32.totalorder %s71, %s73
      %p77 = scmp.eq.s32.totalorder %s16, 0
      %p78 = por %p76, %p77
      %p79 = scmp.ne.s32.totalorder %s71, %s73
      %p80 = scmp.eq.s32.totalorder %s21, 1
      %p81 = por %p79, %p80
      %p82 = scmp.ne.s32.totalorder %s73, %s74
      %p83 = scmp.eq.s32.totalorder %s21, 0
      %p84 = por %p82, %p83
      %p85 = scmp.ne.s32.totalorder %s73, %s74
      %p86 = scmp.eq.s32.totalorder %s22, 1
      %p87 = por %p85, %p86
      %p89 = scmp.ne.s32.totalorder %s74, %s88
      %p90 = scmp.eq.s32.totalorder %s22, 0
      %p91 = por %p89, %p90
      %s93 = sadd.s32 %s92, 1
      %p96 = scmp.eq.s32.totalorder %s16, 1
      %p97 = scmp.ne.s32.totalorder %s92, %s94
      %p98 = scmp.eq.s32.totalorder %s16, 0
      %p99 = por %p97, %p98
      %p100 = scmp.ne.s32.totalorder %s92, %s94
      %p101 = scmp.eq.s32.totalorder %s21, 1
      %p102 = por %p100, %p101
      %p103 = scmp.ne.s32.totalorder %s94, %s95
      %p104 = scmp.eq.s32.totalorder %s21, 0
      %p105 = por %p103, %p104
      %p106 = scmp.ne.s32.totalorder %s94, %s95
      %p107 = scmp.eq.s32.totalorder %s22, 1
      %p108 = por %p106, %p107
      %p110 = scmp.ne.s32.totalorder %s95, %s109
      %p111 = scmp.eq.s32.totalorder %s22, 0
      %p112 = por %p110, %p111
      %s114 = sadd.s32 %s113, 1
      %p117 = scmp.eq.s32.totalorder %s16, 1
      %p118 = scmp.ne.s32.totalorder %s113, %s115
      %p119 = scmp.eq.s32.totalorder %s16, 0
      %p120 = por %p118, %p119
      %p121 = scmp.ne.s32.totalorder %s113, %s115
      %p122 = scmp.eq.s32.totalorder %s21, 1
      %p123 = por %p121, %p122
      %p124 = scmp.ne.s32.totalorder %s115, %s116
      %p125 = scmp.eq.s32.totalorder %s21, 0
      %p126 = por %p124, %p125
      %p127 = scmp.ne.s32.totalorder %s115, %s116
      %p128 = scmp.eq.s32.totalorder %s22, 1
      %p129 = por %p127, %p128
      %p131 = scmp.ne.s32.totalorder %s116, %s130
      %p132 = scmp.eq.s32.totalorder %s22, 0
      %p133 = por %p131, %p132
      %s135 = sadd.s32 %s134, 1
      %p138 = scmp.eq.s32.totalorder %s16, 1
      %p139 = scmp.ne.s32.totalorder %s134, %s136
      %p140 = scmp.eq.s32.totalorder %s16, 0
      %p141 = por %p139, %p140
      %p142 = scmp.ne.s32.totalorder %s134, %s136
      %p143 = scmp.eq.s32.totalorder %s21, 1
      %p144 = por %p142, %p143
      %p145 = scmp.ne.s32.totalorder %s136, %s137
      %p146 = scmp.eq.s32.totalorder %s21, 0
      %p147 = por %p145, %p146
      %p148 = scmp.ne.s32.totalorder %s136, %s137
      %p149 = scmp.eq.s32.totalorder %s22, 1
      %p150 = por %p148, %p149
      %p152 = scmp.ne.s32.totalorder %s137, %s151
      %p153 = scmp.eq.s32.totalorder %s22, 0
      %p154 = por %p152, %p153
      %s156 = sadd.s32 %s155, 1
      %p159 = scmp.eq.s32.totalorder %s16, 1
      %p160 = scmp.ne.s32.totalorder %s155, %s157
      %p161 = scmp.eq.s32.totalorder %s16, 0
      %p162 = por %p160, %p161
      %p163 = scmp.ne.s32.totalorder %s155, %s157
      %p164 = scmp.eq.s32.totalorder %s21, 1
      %p165 = por %p163, %p164
      %p166 = scmp.ne.s32.totalorder %s157, %s158
      %p167 = scmp.eq.s32.totalorder %s21, 0
      %p168 = por %p166, %p167
      %p169 = scmp.ne.s32.totalorder %s157, %s158
      %p170 = scmp.eq.s32.totalorder %s22, 1
      %p171 = por %p169, %p170
      %p173 = scmp.ne.s32.totalorder %s158, %s172
      %p174 = scmp.eq.s32.totalorder %s22, 0
      %p175 = por %p173, %p174
      %s176 = ssub.s32 %s16, %s23
      %p177 = scmp.eq.s32.totalorder %s176, 0
      %s179 = sadd.s32 %s178, 1
      %s180 = scalar_select %p177, %s178, %s179
      %p183 = pneg %p177
      %p184 = scmp.eq.s32.totalorder %s16, 1
      %p185 = por %p183, %p184
      %p186 = scmp.ne.s32.totalorder %s178, %s181
      %p187 = scmp.eq.s32.totalorder %s16, 0
      %p188 = por %p186, %p187
      %p189 = scmp.ne.s32.totalorder %s178, %s181
      %p190 = scmp.eq.s32.totalorder %s21, 1
      %p191 = por %p189, %p190
      %p192 = scmp.ne.s32.totalorder %s181, %s182
      %p193 = scmp.eq.s32.totalorder %s21, 0
      %p194 = por %p192, %p193
      %p195 = scmp.ne.s32.totalorder %s181, %s182
      %p196 = scmp.eq.s32.totalorder %s22, 1
      %p197 = por %p195, %p196
      %p199 = scmp.ne.s32.totalorder %s182, %s198
      %p200 = scmp.eq.s32.totalorder %s22, 0
      %p201 = por %p199, %p200
      %p202 = scmp.le.s32.totalorder 1, %s16
      %p203 = scmp.lt.s32.totalorder %s16, 3
      %p204 = pnand %p202, %p203
      %p205 = pneg %p204
      // Predicated region
      $region9: #{tpu_custom_call.1} parent=5 // pred_check
        _
      $region10: #{tpu_custom_call.1} parent=5 // pred_check_branch
        %207 = sbr.rel (%p204) target = $region12
      $region11: #{tpu_custom_call.1} parent=5 // pred_region
        %s208 = ssub.s32 %s16, 1
        // Predicated region
        $region13: #{tpu_custom_call.1} parent=11 // pred_check
          %p209 = pneg %p63
        $region14: #{tpu_custom_call.1} parent=11 // pred_check_branch
          %211 = sbr.rel (%p209) target = $region16
        $region15: #{tpu_custom_call.1} parent=11 // pred_region
          _
        $region16: #{tpu_custom_call.1} parent=11 // pred_fallthru
          _
        // Predicated region
        $region17: #{tpu_custom_call.1} parent=11 // pred_check
          %p212 = pneg %p84
        $region18: #{tpu_custom_call.1} parent=11 // pred_check_branch
          %214 = sbr.rel (%p212) target = $region20
        $region19: #{tpu_custom_call.1} parent=11 // pred_region
          _
        $region20: #{tpu_custom_call.1} parent=11 // pred_fallthru
          _
        // Predicated region
        $region21: #{tpu_custom_call.1} parent=11 // pred_check
          %p215 = pneg %p105
        $region22: #{tpu_custom_call.1} parent=11 // pred_check_branch
          %217 = sbr.rel (%p215) target = $region24
        $region23: #{tpu_custom_call.1} parent=11 // pred_region
          _
        $region24: #{tpu_custom_call.1} parent=11 // pred_fallthru
          _
        // Predicated region
        $region25: #{tpu_custom_call.1} parent=11 // pred_check
          %p218 = pneg %p126
        $region26: #{tpu_custom_call.1} parent=11 // pred_check_branch
          %220 = sbr.rel (%p218) target = $region28
        $region27: #{tpu_custom_call.1} parent=11 // pred_region
          _
        $region28: #{tpu_custom_call.1} parent=11 // pred_fallthru
          _
        // Predicated region
        $region29: #{tpu_custom_call.1} parent=11 // pred_check
          %p221 = pneg %p147
        $region30: #{tpu_custom_call.1} parent=11 // pred_check_branch
          %223 = sbr.rel (%p221) target = $region32
        $region31: #{tpu_custom_call.1} parent=11 // pred_region
          _
        $region32: #{tpu_custom_call.1} parent=11 // pred_fallthru
          _
        // Predicated region
        $region33: #{tpu_custom_call.1} parent=11 // pred_check
          %p224 = pneg %p168
        $region34: #{tpu_custom_call.1} parent=11 // pred_check_branch
          %226 = sbr.rel (%p224) target = $region36
        $region35: #{tpu_custom_call.1} parent=11 // pred_region
          _
        $region36: #{tpu_custom_call.1} parent=11 // pred_fallthru
          _
      $region12: #{tpu_custom_call.1} parent=5 // pred_fallthru
        _
      %p227 = scmp.lt.s32.totalorder %s16, 2
      // Predicated region
      $region37: #{tpu_custom_call.1} parent=5 // pred_check
        %p228 = pneg %p227
      $region38: #{tpu_custom_call.1} parent=5 // pred_check_branch
        %230 = sbr.rel (%p228) target = $region40
      $region39: #{tpu_custom_call.1} parent=5 // pred_region
        // Predicated region
        $region41: #{tpu_custom_call.1} parent=39 // pred_check
          %p231 = pneg %p36
        $region42: #{tpu_custom_call.1} parent=39 // pred_check_branch
          %233 = sbr.rel (%p231) target = $region44
        $region43: #{tpu_custom_call.1} parent=39 // pred_region
          %s234 = sand.u32 %s26, 1
          %s235 = sand.u32 %s26, 1
          %s236 = smul.addr %s235, 16
          %s237 = scalar_lea.vmem [#allocation2], %s236
          %s238 = smul.addr %s16, 8
          %s239 = scalar_lea.vmem %s0, %s238
          // Predicated region
          $region45: #{tpu_custom_call.1} parent=43 // pred_check
            _
          $region46: #{tpu_custom_call.1} parent=43 // pred_check_branch
            %241 = sbr.rel (0) target = $region48
          $region47: #{tpu_custom_call.1} parent=43 // pred_region
            // Predicated region
            $region49: #{tpu_custom_call.1} parent=47 // pred_check
              _
            $region50: #{tpu_custom_call.1} parent=47 // pred_check_branch
              %243 = sbr.rel (0) target = $region52
            $region51: #{tpu_custom_call.1} parent=47 // pred_region
              // Predicated region
              $region64: #{tpu_custom_call.1} parent=51 // pred_check
                _
              $region65: #{tpu_custom_call.1} parent=51 // pred_check_branch
                %260 = sbr.rel (0) target = $region67
              $region66: #{tpu_custom_call.1} parent=51 // pred_region
                loop: start=0, step=1, limit=1
                $region68: #{tpu_custom_call.1} parent=66 // loop_pre_header
                  _
                $region69: #{tpu_custom_call.1} parent=66 // loop_header
                  %s262 = sphi 0, %s266
                  %p263 = scmp.ge.s32.totalorder %s262, 1
                  %s267 = sphi %s239, %s239
                  %s268 = sphi %s237, %s237
                $region70: #{tpu_custom_call.1} parent=66 // loop_header_branch
                  %265 = sbr.rel (%p263) target = $region74
                $region71: #{tpu_custom_call.1} parent=66 // loop_body
                  %v269 = vld [vmem:[%s267] sm:$0xff]
                  %270 = vst [vmem:[%s268] sm:$0xff] %v269
                  %v271 = vld [vmem:[%s267 + $0x10] sm:$0xff]
                  %272 = vst [vmem:[%s268 + $0x8] sm:$0xff] %v271
                $region72: #{tpu_custom_call.1} parent=66 // loop_footer
                  %s266 = sadd.s32 1, %s262
                $region73: #{tpu_custom_call.1} parent=66 // loop_footer_branch
                  %261 = sbr.rel target = $region69
                $region74: #{tpu_custom_call.1} parent=66 // loop_exit
                  _
              $region67: #{tpu_custom_call.1} parent=51 // pred_fallthru
                _
              // Predicated region
              $region75: #{tpu_custom_call.1} parent=51 // pred_check
                _
              $region76: #{tpu_custom_call.1} parent=51 // pred_check_branch
                %274 = sbr.rel target = $region78
              $region77: #{tpu_custom_call.1} parent=51 // pred_region
                _
              $region78: #{tpu_custom_call.1} parent=51 // pred_fallthru
                _
            $region52: #{tpu_custom_call.1} parent=47 // pred_fallthru
              _
            // Predicated region
            $region53: #{tpu_custom_call.1} parent=47 // pred_check
              _
            $region54: #{tpu_custom_call.1} parent=47 // pred_check_branch
              %245 = sbr.rel target = $region56
            $region55: #{tpu_custom_call.1} parent=47 // pred_region
              loop: start=0, step=1, limit=1
              $region57: #{tpu_custom_call.1} parent=55 // loop_pre_header
                _
              $region58: #{tpu_custom_call.1} parent=55 // loop_header
                %s248 = sphi 0, %s252
                %p249 = scmp.ge.s32.totalorder %s248, 1
                %s253 = sphi %s239, %s239
                %s254 = sphi %s237, %s237
              $region59: #{tpu_custom_call.1} parent=55 // loop_header_branch
                %251 = sbr.rel (%p249) target = $region63
              $region60: #{tpu_custom_call.1} parent=55 // loop_body
                %v255 = vld [vmem:[%s253] sm:$0xff]
                %256 = vst [vmem:[%s254] sm:$0xff] %v255
                %v257 = vld [vmem:[%s253 + $0x10] sm:$0xff]
                %258 = vst [vmem:[%s254 + $0x8] sm:$0xff] %v257
              $region61: #{tpu_custom_call.1} parent=55 // loop_footer
                %s252 = sadd.s32 1, %s248
              $region62: #{tpu_custom_call.1} parent=55 // loop_footer_branch
                %247 = sbr.rel target = $region58
              $region63: #{tpu_custom_call.1} parent=55 // loop_exit
                _
            $region56: #{tpu_custom_call.1} parent=47 // pred_fallthru
              _
          $region48: #{tpu_custom_call.1} parent=43 // pred_fallthru
            _
          %275 = vnop
        $region44: #{tpu_custom_call.1} parent=39 // pred_fallthru
          _
      $region40: #{tpu_custom_call.1} parent=5 // pred_fallthru
        _
      %p276 = scmp.le.s32.totalorder 1, %s16
      %p277 = scmp.lt.s32.totalorder %s16, 3
      %p278 = pnand %p276, %p277
      %p279 = pneg %p278
      // Predicated region
      $region79: #{tpu_custom_call.1} parent=5 // pred_check
        _
      $region80: #{tpu_custom_call.1} parent=5 // pred_check_branch
        %281 = sbr.rel (%p278) target = $region82
      $region81: #{tpu_custom_call.1} parent=5 // pred_region
        %s282 = ssub.s32 %s16, 1
        %s283 = sand.u32 %s29, 1
        %s284 = sand.u32 %s29, 1
        %s285 = smul.addr %s284, 16
        %s286 = scalar_lea.vmem [#allocation2], %s285
        // Predicated region
        $region83: #{tpu_custom_call.1} parent=81 // pred_check
          %p287 = pneg %p42
        $region84: #{tpu_custom_call.1} parent=81 // pred_check_branch
          %289 = sbr.rel (%p287) target = $region86
        $region85: #{tpu_custom_call.1} parent=81 // pred_region
          _
        $region86: #{tpu_custom_call.1} parent=81 // pred_fallthru
          _
        %s290 = sand.u32 %s29, 1
        %s291 = sand.u32 %s29, 1
        %s292 = smul.addr %s291, 16
        %s293 = scalar_lea.vmem [#allocation2], %s292
        %p294 = pneg %p42
        %p295 = pneg %p39
        %p296 = pneg %p63
        %p297 = pneg %p60
        %p298 = pneg %p84
        %p299 = pneg %p81
        %p300 = pneg %p105
        %p301 = pneg %p102
        %p302 = pneg %p126
        %p303 = pneg %p123
        %p304 = pneg %p147
        %p305 = pneg %p144
        %p306 = pneg %p168
        %p307 = pneg %p165
        %p308 = pneg %p194
        %p309 = pneg %p191
        %s310 = sand.u32 %s181, 1
        %s311 = scalar_lea.sflag [#allocation4], %s310
        %s312 = sand.u32 %s181, 1
        %s313 = smul.addr %s312, 4
        %s314 = scalar_lea.vmem [#allocation3], %s313
        %v316 = vld [vmem:[%s286] sm:$0xff]
        %v317 = vld [vmem:[%s286 + $0x8] sm:$0xff]
        %v318 = vpack.c.bf16 %v317, %v316
        %v319 = vld [vmem:[%s1] sm:$0xf]
        %v320 = vld [vmem:[%s1 + $0x4] sm:$0xf]
        %v321 = vld [vmem:[%s1 + $0x8] sm:$0xf]
        %v322 = vld [vmem:[%s1 + $0xc] sm:$0xf]
        %v323 = vld [vmem:[%s2] sm:$0xff]
        %v324 = vld [vmem:[%s2 + $0x8] sm:$0xff]
        %v325 = vld [vmem:[%s2 + $0x10] sm:$0xff]
        %v326 = vld [vmem:[%s2 + $0x18] sm:$0xff]
        %328 = vset.pattern.permute.xlu0 0
        %329 = vperm.xlu0 %328, %v323
        %v330 = vpop.permute.xlu0 %329
        %333 = vset.pattern.permute.xlu0 0
        %334 = vperm.xlu0 %333, %v324
        %v335 = vpop.permute.xlu0 %334
        %338 = vset.pattern.permute.xlu0 0
        %339 = vperm.xlu0 %338, %v325
        %v340 = vpop.permute.xlu0 %339
        %343 = vset.pattern.permute.xlu0 0
        %344 = vperm.xlu0 %343, %v326
        %v345 = vpop.permute.xlu0 %344
        %v351 = vunpack.c.l.b16 %v319
        %v352 = vunpack.c.l.b16 %v320
        %v353 = vunpack.c.l.b16 %v321
        %v354 = vunpack.c.l.b16 %v322
        %v355 = vpack.c.b16 %v352, %v351
        %v356 = vpack.c.b16 %v354, %v353
        %vm357 = vcmask 130048
        %v359 = vsel %vm357, %v355, 0
        %v362 = vsel %vm357, %v356, 0
        %364 = vmatprep.subr.bf16.mxu0 0
        %365 = vmatpush1.bf16.msra.mxu0 %v318
        %366 = vmatprep.subr.bf16.mxu0 0
        %367 = vmatpush1.bf16.msra.mxu0 0
        %368 = vmatprep.subr.bf16.mxu0 0
        %369 = vmatpush1.bf16.msra.mxu0 0
        %370 = vmatprep.subr.bf16.mxu0 0
        %371 = vmatpush1.bf16.msra.mxu0 0
        %372 = vmatprep.subr.bf16.mxu0 0
        %373 = vmatpush1.bf16.msra.mxu0 0
        %374 = vmatprep.subr.bf16.mxu0 0
        %375 = vmatpush1.bf16.msra.mxu0 0
        %376 = vmatprep.subr.bf16.mxu0 0
        %377 = vmatpush1.bf16.msra.mxu0 0
        %378 = vmatprep.subr.bf16.mxu0 0
        %379 = vmatpush1.bf16.msra.mxu0 0
        %380 = vmatprep.subr.bf16.mxu0 0
        %381 = vmatpush1.bf16.msra.mxu0 0
        %382 = vmatprep.subr.bf16.mxu0 0
        %383 = vmatpush1.bf16.msra.mxu0 0
        %384 = vmatprep.subr.bf16.mxu0 0
        %385 = vmatpush1.bf16.msra.mxu0 0
        %386 = vmatprep.subr.bf16.mxu0 0
        %387 = vmatpush1.bf16.msra.mxu0 0
        %388 = vmatprep.subr.bf16.mxu0 0
        %389 = vmatpush1.bf16.msra.mxu0 0
        %390 = vmatprep.subr.bf16.mxu0 0
        %391 = vmatpush1.bf16.msra.mxu0 0
        %392 = vmatprep.subr.bf16.mxu0 0
        %393 = vmatpush1.bf16.msra.mxu0 0
        %394 = vmatprep.subr.bf16.mxu0 0
        %395 = vmatpush1.bf16.msra.mxu0 0
        %396 = vmatprep.mubr.bf16.mxu0 0
        %397 = vmatmul.mubr.bf16.gmra.mrb[0].mxu0 %v359
        %v398 = vpop.f32.mrb[0].mxu0
        %v399 = vadd.f32 %v330, %v398
        %v400 = vpop.f32.mrb[0].mxu0
        %v401 = vpop.f32.mrb[0].mxu0
        %v402 = vadd.f32 %v335, %v401
        %v403 = vpop.f32.mrb[0].mxu0
        %404 = vmatprep.mubr.bf16.mxu0 0
        %405 = vmatmul.mubr.bf16.gmra.mrb[0].mxu0 %v362
        %v406 = vpop.f32.mrb[0].mxu0
        %v407 = vadd.f32 %v340, %v406
        %v408 = vpop.f32.mrb[0].mxu0
        %v409 = vpop.f32.mrb[0].mxu0
        %v410 = vadd.f32 %v345, %v409
        %v411 = vpop.f32.mrb[0].mxu0
        %412 = vdwg.mxu0
        %v413 = vmax.f32 %v399, 0.0
        %v414 = vmax.f32 %v402, 0.0
        %v415 = vmax.f32 %v407, 0.0
        %v416 = vmax.f32 %v410, 0.0
        %v417 = vld [vmem:[%s3] sm:$0xf]
        %v418 = vld [vmem:[%s3 + $0x4] sm:$0xf]
        %v419 = vld [vmem:[%s3 + $0x8] sm:$0xf]
        %v420 = vld [vmem:[%s3 + $0xc] sm:$0xf]
        %v421 = vpack.c.bf16 %v414, %v413
        %v422 = vpack.c.bf16 %v416, %v415
        %v423 = vld [vmem:[%s4] sm:$0xff]
        %v424 = vld [vmem:[%s4 + $0x8] sm:$0xff]
        %v425 = vld [vmem:[%s4 + $0x10] sm:$0xff]
        %v426 = vld [vmem:[%s4 + $0x18] sm:$0xff]
        %428 = vset.pattern.permute.xlu0 0
        %429 = vperm.xlu0 %428, %v423
        %v430 = vpop.permute.xlu0 %429
        %433 = vset.pattern.permute.xlu0 0
        %434 = vperm.xlu0 %433, %v424
        %v435 = vpop.permute.xlu0 %434
        %438 = vset.pattern.permute.xlu0 0
        %439 = vperm.xlu0 %438, %v425
        %v440 = vpop.permute.xlu0 %439
        %443 = vset.pattern.permute.xlu0 0
        %444 = vperm.xlu0 %443, %v426
        %v445 = vpop.permute.xlu0 %444
        %v451 = vunpack.c.l.b16 %v417
        %v452 = vunpack.c.l.b16 %v418
        %v453 = vunpack.c.l.b16 %v419
        %v454 = vunpack.c.l.b16 %v420
        %v455 = vpack.c.b16 %v452, %v451
        %v456 = vpack.c.b16 %v454, %v453
        %vm457 = vcmask 261120
        %v459 = vsel %vm457, %v455, 0
        %v462 = vsel %vm457, %v456, 0
        %464 = vmatprep.subr.bf16.mxu0 0
        %465 = vmatpush1.bf16.msra.mxu0 %v421
        %466 = vmatprep.subr.bf16.mxu0 0
        %467 = vmatpush1.bf16.msra.mxu0 %v422
        %468 = vmatprep.subr.bf16.mxu0 0
        %469 = vmatpush1.bf16.msra.mxu0 0
        %470 = vmatprep.subr.bf16.mxu0 0
        %471 = vmatpush1.bf16.msra.mxu0 0
        %472 = vmatprep.subr.bf16.mxu0 0
        %473 = vmatpush1.bf16.msra.mxu0 0
        %474 = vmatprep.subr.bf16.mxu0 0
        %475 = vmatpush1.bf16.msra.mxu0 0
        %476 = vmatprep.subr.bf16.mxu0 0
        %477 = vmatpush1.bf16.msra.mxu0 0
        %478 = vmatprep.subr.bf16.mxu0 0
        %479 = vmatpush1.bf16.msra.mxu0 0
        %480 = vmatprep.subr.bf16.mxu0 0
        %481 = vmatpush1.bf16.msra.mxu0 0
        %482 = vmatprep.subr.bf16.mxu0 0
        %483 = vmatpush1.bf16.msra.mxu0 0
        %484 = vmatprep.subr.bf16.mxu0 0
        %485 = vmatpush1.bf16.msra.mxu0 0
        %486 = vmatprep.subr.bf16.mxu0 0
        %487 = vmatpush1.bf16.msra.mxu0 0
        %488 = vmatprep.subr.bf16.mxu0 0
        %489 = vmatpush1.bf16.msra.mxu0 0
        %490 = vmatprep.subr.bf16.mxu0 0
        %491 = vmatpush1.bf16.msra.mxu0 0
        %492 = vmatprep.subr.bf16.mxu0 0
        %493 = vmatpush1.bf16.msra.mxu0 0
        %494 = vmatprep.subr.bf16.mxu0 0
        %495 = vmatpush1.bf16.msra.mxu0 0
        %496 = vmatprep.mubr.bf16.mxu0 0
        %497 = vmatmul.mubr.bf16.gmra.mrb[0].mxu0 %v459
        %v498 = vpop.f32.mrb[0].mxu0
        %v499 = vadd.f32 %v430, %v498
        %v500 = vpop.f32.mrb[0].mxu0
        %v501 = vpop.f32.mrb[0].mxu0
        %v502 = vadd.f32 %v435, %v501
        %v503 = vpop.f32.mrb[0].mxu0
        %504 = vmatprep.mubr.bf16.mxu0 0
        %505 = vmatmul.mubr.bf16.gmra.mrb[0].mxu0 %v462
        %v506 = vpop.f32.mrb[0].mxu0
        %v507 = vadd.f32 %v440, %v506
        %v508 = vpop.f32.mrb[0].mxu0
        %v509 = vpop.f32.mrb[0].mxu0
        %v510 = vadd.f32 %v445, %v509
        %v511 = vpop.f32.mrb[0].mxu0
        %512 = vdwg.mxu0
        %v513 = vxor.u32 %v499, 2147483648
        %v514 = vxor.u32 %v502, 2147483648
        %v515 = vxor.u32 %v507, 2147483648
        %v516 = vxor.u32 %v510, 2147483648
        %v517 = vmul.f32 %v513, 1.442695
        %v518 = vpow.pop %v517
        %v519 = vmul.f32 %v514, 1.442695
        %v520 = vpow.pop %v519
        %v521 = vmul.f32 %v515, 1.442695
        %v522 = vpow.pop %v521
        %v523 = vmul.f32 %v516, 1.442695
        %v524 = vpow.pop %v523
        %v525 = vadd.f32 %v518, 1.0
        %v526 = vadd.f32 %v520, 1.0
        %v527 = vadd.f32 %v522, 1.0
        %v528 = vadd.f32 %v524, 1.0
        %v529 = vrcp.pop %v525
        %v530 = vmul.f32 1.0, %v529
        %v531 = vrcp.pop %v526
        %v532 = vmul.f32 1.0, %v531
        %v533 = vrcp.pop %v527
        %v534 = vmul.f32 1.0, %v533
        %v535 = vrcp.pop %v528
        %v536 = vmul.f32 1.0, %v535
        %v537 = vld [vmem:[%s5] sm:$0xf]
        %v538 = vpack.c.bf16 %v532, %v530
        %v539 = vpack.c.bf16 %v536, %v534
        %v540 = vld [vmem:[%s6] sm:$0xff]
        %542 = vset.pattern.permute.xlu0 0
        %543 = vperm.xlu0 %542, %v540
        %v544 = vpop.permute.xlu0 %543
        %v547 = vsel %vm457, %v537, 0
        %549 = vmatprep.subr.bf16.mxu0 0
        %550 = vmatpush1.bf16.msra.mxu0 %v538
        %551 = vmatprep.subr.bf16.mxu0 0
        %552 = vmatpush1.bf16.msra.mxu0 %v539
        %553 = vmatprep.subr.bf16.mxu0 0
        %554 = vmatpush1.bf16.msra.mxu0 0
        %555 = vmatprep.subr.bf16.mxu0 0
        %556 = vmatpush1.bf16.msra.mxu0 0
        %557 = vmatprep.subr.bf16.mxu0 0
        %558 = vmatpush1.bf16.msra.mxu0 0
        %559 = vmatprep.subr.bf16.mxu0 0
        %560 = vmatpush1.bf16.msra.mxu0 0
        %561 = vmatprep.subr.bf16.mxu0 0
        %562 = vmatpush1.bf16.msra.mxu0 0
        %563 = vmatprep.subr.bf16.mxu0 0
        %564 = vmatpush1.bf16.msra.mxu0 0
        %565 = vmatprep.subr.bf16.mxu0 0
        %566 = vmatpush1.bf16.msra.mxu0 0
        %567 = vmatprep.subr.bf16.mxu0 0
        %568 = vmatpush1.bf16.msra.mxu0 0
        %569 = vmatprep.subr.bf16.mxu0 0
        %570 = vmatpush1.bf16.msra.mxu0 0
        %571 = vmatprep.subr.bf16.mxu0 0
        %572 = vmatpush1.bf16.msra.mxu0 0
        %573 = vmatprep.subr.bf16.mxu0 0
        %574 = vmatpush1.bf16.msra.mxu0 0
        %575 = vmatprep.subr.bf16.mxu0 0
        %576 = vmatpush1.bf16.msra.mxu0 0
        %577 = vmatprep.subr.bf16.mxu0 0
        %578 = vmatpush1.bf16.msra.mxu0 0
        %579 = vmatprep.subr.bf16.mxu0 0
        %580 = vmatpush1.bf16.msra.mxu0 0
        %581 = vmatprep.mubr.bf16.mxu0 0
        %582 = vmatmul.mubr.bf16.gmra.mrb[0].mxu0 %v547
        %v583 = vpop.f32.mrb[0].mxu0
        %v584 = vadd.f32 %v544, %v583
        %v585 = vpop.f32.mrb[0].mxu0
        %v586 = vpop.f32.mrb[0].mxu0
        %v587 = vpop.f32.mrb[0].mxu0
        %588 = vdwg.mxu0
        %v589 = vpack.c.bf16 %v584, %v584
        %590 = vst [vmem:[%s314] sm:$0xf] %v589
        %s591 = sand.u32 %s181, 1
        %s592 = scalar_lea.sflag [#allocation4], %s591
        %s593 = sand.u32 %s181, 1
        %s594 = smul.addr %s593, 4
        %s595 = scalar_lea.vmem [#allocation3], %s594
        // Predicated region
        $region87: #{tpu_custom_call.1} parent=81 // pred_check
          %p596 = pneg %p191
        $region88: #{tpu_custom_call.1} parent=81 // pred_check_branch
          %598 = sbr.rel (%p596) target = $region90
        $region89: #{tpu_custom_call.1} parent=81 // pred_region
          %s600 = ssub.s32 64, 64
          %601 = vsyncadd %s592, %s600
          %s602 = smul.addr %s21, 64
          %s603 = scalar_lea.hbm %s7, %s602
          %s605 = sshll.u32 %s595, 4
          %s606 = int_to_ptr.vmem [resolvable:$true] %s605
          %608 = dma.vmem_to_hbm [thread:$0]  %s606, 64, %s603, %s592
        $region90: #{tpu_custom_call.1} parent=81 // pred_fallthru
          _
      $region82: #{tpu_custom_call.1} parent=5 // pred_fallthru
        _
      %p609 = scmp.le.s32.totalorder 2, %s16
      // Predicated region
      $region91: #{tpu_custom_call.1} parent=5 // pred_check
        %p610 = pneg %p609
      $region92: #{tpu_custom_call.1} parent=5 // pred_check_branch
        %612 = sbr.rel (%p610) target = $region94
      $region93: #{tpu_custom_call.1} parent=5 // pred_region
        %s613 = ssub.s32 %s16, 2
        // Predicated region
        $region95: #{tpu_custom_call.1} parent=93 // pred_check
          %p614 = pneg %p197
        $region96: #{tpu_custom_call.1} parent=93 // pred_check_branch
          %616 = sbr.rel (%p614) target = $region98
        $region97: #{tpu_custom_call.1} parent=93 // pred_region
          %s617 = sand.u32 %s182, 1
          %s618 = scalar_lea.sflag [#allocation4], %s617
          %s619 = sand.u32 %s182, 1
          %s620 = smul.addr %s619, 4
          %s621 = scalar_lea.vmem [#allocation3], %s620
          %622 = dma.done %s618, 64
        $region98: #{tpu_custom_call.1} parent=93 // pred_fallthru
          _
      $region94: #{tpu_custom_call.1} parent=5 // pred_fallthru
        _
    $region6: #{tpu_custom_call.1} parent=1 // loop_footer
      %s20 = sadd.s32 1, %s16
    $region7: #{tpu_custom_call.1} parent=1 // loop_footer_branch
      %15 = sbr.rel target = $region3
    $region8: #{tpu_custom_call.1} parent=1 // loop_exit
      _
    %623 = vsyncpa [#allocation4], 1
    %s624 = scalar_lea.sflag [#allocation4], 1
    %625 = vsyncpa %s624, 1

</llo_original>
